<compile_context>
chip_gen: v7x
topology: tpu7x:2x2x1
jax: 0.10.0
libtpu: 0.0.40
codegen_flags: <defaults>
</compile_context>

<pallas_src>
import functools

import jax
import jax.numpy as jnp
from jax import lax
from jax.experimental import pallas as pl
from jax.experimental.pallas import tpu as pltpu


def _wtv_tile_kernel(pred_ref, w_ref, out_ref, carry_p_ref, carry_w_ref, *, H):
    """Partial TV sums for one (TH, W) row-tile of one (n, c) image."""
    TH, W = pred_ref.shape
    i = pl.program_id(1)  # row-tile index (sequential 'arbitrary' axis)

    p = pred_ref[...].astype(jnp.float32)  # (TH, W)
    w = w_ref[...].astype(jnp.float32)     # (TH, W)

    # Global row id of every local row; rows >= H are block padding -> masked out.
    row = lax.broadcasted_iota(jnp.int32, (TH, W), 0)
    grow = i * TH + row
    row_valid = grow < H

    # ---- horizontal diffs: |p[:, j] - p[:, j+1]| * w[:, j], j = 0..W-2 ----------
    x_terms = jnp.abs(p[:, : W - 1] - p[:, 1:]) * w[:, : W - 1]
    s_x = jnp.sum(jnp.where(row_valid[:, : W - 1], x_terms, 0.0))

    # ---- vertical diffs inside the tile: pair (g, g+1), weight at row g --------
    y_terms = jnp.abs(p[: TH - 1, :] - p[1:, :]) * w[: TH - 1, :]
    y_valid = grow[: TH - 1, :] < (H - 1)  # upper row of the pair must be <= H-2
    s_y = jnp.sum(jnp.where(y_valid, y_terms, 0.0))

    # ---- vertical diff across the tile boundary (carried halo row) -------------
    @pl.when(i == 0)
    def _init_carry():  # no previous tile: make the boundary term exactly zero
        carry_p_ref[...] = p[0:1, :]
        carry_w_ref[...] = jnp.zeros((1, W), jnp.float32)

    b_terms = jnp.abs(carry_p_ref[...] - p[0:1, :]) * carry_w_ref[...]
    s_y = s_y + jnp.where(i > 0, jnp.sum(b_terms), 0.0)

    # Carry this tile's last row (pred + weight) to the next row-tile.
    carry_p_ref[...] = p[TH - 1 : TH, :]
    carry_w_ref[...] = w[TH - 1 : TH, :]

    # ---- weight normalizers (each weight element counted exactly once) ---------
    wy = jnp.sum(jnp.where(grow < (H - 1), w, 0.0))                     # w[:,:,:-1,:]
    wx = jnp.sum(jnp.where(row_valid[:, : W - 1], w[:, : W - 1], 0.0))  # w[:,:,:,:-1]

    # ---- emit a lane-dense (8, 128) partial-sum slab ----------------------------
    sub = lax.broadcasted_iota(jnp.int32, (8, 128), 0)
    lane = lax.broadcasted_iota(jnp.int32, (8, 128), 1)
    slab = jnp.zeros((8, 128), jnp.float32)
    slab = jnp.where((sub == 0) & (lane == 0), s_y, slab)
    slab = jnp.where((sub == 0) & (lane == 1), s_x, slab)
    slab = jnp.where((sub == 0) & (lane == 2), wy, slab)
    slab = jnp.where((sub == 0) & (lane == 3), wx, slab)
    out_ref[...] = slab


def _pick_tile_rows(H, W, itemsize, target_bytes=2 * 1024 * 1024):
    # ~2 MiB per input tile: two double-buffered inputs stay well inside the
    # default scoped VMEM on all generations (16 MiB v5e, 32 MiB v6e/v7x).
    if H * W * itemsize <= target_bytes:
        return H  # single row-tile: block equals full H (no 8-divisibility needed)
    rows = (target_bytes // (W * itemsize)) // 8 * 8
    rows = max(8, rows)
    return min(rows, H)


def weighted_tv_loss(pred, weight=None, loss_weight=1.0,
                     tile_bytes=2 * 1024 * 1024):
    """Pallas implementation of WeightedTVLoss.forward(pred, weight) (mean reduction)."""
    N, C, H, W = pred.shape
    if weight is None:
        weight = jnp.ones(pred.shape, pred.dtype)
    if weight.shape[1] == 1 and C > 1:
        # Broadcasting a 1-channel weight reproduces BasicSR's
        # `weight.sum() * loss.size(1)` mean normalizer.
        weight = jnp.broadcast_to(weight, pred.shape)
    assert weight.shape == pred.shape, (weight.shape, pred.shape)

    B = N * C
    pred3 = pred.reshape(B, H, W)   # contiguous merge of leading dims: metadata only
    w3 = weight.reshape(B, H, W)

    itemsize = max(jnp.dtype(pred.dtype).itemsize, jnp.dtype(weight.dtype).itemsize)
    TH = _pick_tile_rows(H, W, itemsize, tile_bytes)
    num_h = pl.cdiv(H, TH)

    parts = pl.pallas_call(
        functools.partial(_wtv_tile_kernel, H=H),
        out_shape=jax.ShapeDtypeStruct((B, num_h, 8, 128), jnp.float32),
        grid_spec=pltpu.PrefetchScalarGridSpec(
            num_scalar_prefetch=0,
            grid=(B, num_h),
            in_specs=[
                pl.BlockSpec((None, TH, W), lambda b, i: (b, i, 0)),
                pl.BlockSpec((None, TH, W), lambda b, i: (b, i, 0)),
            ],
            out_specs=pl.BlockSpec((None, None, 8, 128), lambda b, i: (b, i, 0, 0)),
            scratch_shapes=[
                pltpu.VMEM((1, W), jnp.float32),  # carried pred halo row
                pltpu.VMEM((1, W), jnp.float32),  # carried weight halo row
            ],
        ),
        compiler_params=pltpu.CompilerParams(
            dimension_semantics=("parallel", "arbitrary"),
            vmem_limit_bytes=32 * 1024 * 1024,
        ),
    )(pred3, w3)

    # Final (tiny) reduction + weighted-mean normalization in JAX glue.
    s_y = jnp.sum(parts[:, :, 0, 0])
    s_x = jnp.sum(parts[:, :, 0, 1])
    w_y = jnp.sum(parts[:, :, 0, 2])
    w_x = jnp.sum(parts[:, :, 0, 3])

    y_diff = s_y / w_y
    x_diff = s_x / w_x
    return loss_weight * (x_diff + y_diff)


def _reference_weighted_tv_loss(pred, weight, loss_weight=1.0):
    """Pure-JAX reference of the same forward (for a correctness check)."""
    pred = pred.astype(jnp.float32)
    weight = weight.astype(jnp.float32)
    y_num = jnp.sum(jnp.abs(pred[:, :, :-1, :] - pred[:, :, 1:, :]) * weight[:, :, :-1, :])
    y_den = jnp.sum(weight[:, :, :-1, :])
    x_num = jnp.sum(jnp.abs(pred[:, :, :, :-1] - pred[:, :, :, 1:]) * weight[:, :, :, :-1])
    x_den = jnp.sum(weight[:, :, :, :-1])
    return loss_weight * (x_num / x_den + y_num / y_den)


if __name__ == "__main__":
    key = jax.random.PRNGKey(0)
    k1, k2 = jax.random.split(key)

    N, C, H, W = 2, 4, 16, 16
    pred = jax.random.normal(k1, (N, C, H, W), dtype=jnp.float32)
    weight = jax.random.uniform(k2, (N, C, H, W), dtype=jnp.float32,
                                minval=0.1, maxval=1.0)

    loss = weighted_tv_loss(pred, weight)
    jax.block_until_ready(loss)

    ref = _reference_weighted_tv_loss(pred, weight)
    rel_err = abs(float(loss) - float(ref)) / max(abs(float(ref)), 1e-6)
    assert rel_err < 1e-4, (float(loss), float(ref), rel_err)

    print("KERNEL_OK")
</pallas_src>

<mosaic_0001>
module attributes {stable_mosaic.version = 11 : i64} {
  func.func @_wtv_tile_kernel(%arg0: i32, %arg1: i32, %arg2: memref<1x16x16xf32, #tpu.memory_space<vmem>>, %arg3: memref<1x16x16xf32, #tpu.memory_space<vmem>>, %arg4: memref<1x1x8x128xf32, #tpu.memory_space<vmem>>, %arg5: memref<1x16xf32, #tpu.memory_space<vmem>>, %arg6: memref<1x16xf32, #tpu.memory_space<vmem>>) attributes {dimension_semantics = [#tpu.dimension_semantics<parallel>, #tpu.dimension_semantics<arbitrary>], iteration_bounds = array<i64: 8, 1>, scalar_prefetch = 0 : i64, scratch_operands = 2 : i64, tpu.core_type = #tpu.core_type<tc>, window_params = [{transform_indices = @transform_0, window_bounds = array<i64: 1, 16, 16>}, {transform_indices = @transform_1, window_bounds = array<i64: 1, 16, 16>}, {transform_indices = @transform_2, window_bounds = array<i64: 1, 1, 8, 128>}]} {
    %c0 = arith.constant 0 : index
    %c0_0 = arith.constant 0 : index
    %c0_1 = arith.constant 0 : index
    %0 = vector.load %arg2[%c0, %c0_0, %c0_1] : memref<1x16x16xf32, #tpu.memory_space<vmem>>, vector<1x16x16xf32>
    %1 = vector.shape_cast %0 : vector<1x16x16xf32> to vector<16x16xf32>
    %c0_2 = arith.constant 0 : index
    %c0_3 = arith.constant 0 : index
    %c0_4 = arith.constant 0 : index
    %2 = vector.load %arg3[%c0_2, %c0_3, %c0_4] : memref<1x16x16xf32, #tpu.memory_space<vmem>>, vector<1x16x16xf32>
    %3 = vector.shape_cast %2 : vector<1x16x16xf32> to vector<16x16xf32>
    %4 = tpu.iota {dimensions = array<i32: 0>} : vector<16x16xi32>
    %c16_i32 = arith.constant 16 : i32
    %5 = arith.muli %arg1, %c16_i32 : i32
    %6 = vector.broadcast %5 : i32 to vector<16x16xi32>
    %7 = arith.addi %6, %4 : vector<16x16xi32>
    %c16_i32_5 = arith.constant 16 : i32
    %8 = vector.broadcast %c16_i32_5 : i32 to vector<16x16xi32>
    %9 = arith.cmpi slt, %7, %8 : vector<16x16xi32>
    %10 = vector.extract_strided_slice %1 {offsets = [0, 0], sizes = [16, 15], strides = [1, 1]} : vector<16x16xf32> to vector<16x15xf32>
    %11 = vector.extract_strided_slice %1 {offsets = [0, 1], sizes = [16, 15], strides = [1, 1]} : vector<16x16xf32> to vector<16x15xf32>
    %12 = arith.subf %10, %11 : vector<16x15xf32>
    %13 = math.absf %12 : vector<16x15xf32>
    %14 = vector.extract_strided_slice %3 {offsets = [0, 0], sizes = [16, 15], strides = [1, 1]} : vector<16x16xf32> to vector<16x15xf32>
    %15 = arith.mulf %13, %14 : vector<16x15xf32>
    %16 = vector.extract_strided_slice %9 {offsets = [0, 0], sizes = [16, 15], strides = [1, 1]} : vector<16x16xi1> to vector<16x15xi1>
    %cst = arith.constant 0.000000e+00 : f32
    %17 = vector.broadcast %cst : f32 to vector<16x15xf32>
    %18 = arith.select %16, %15, %17 : vector<16x15xi1>, vector<16x15xf32>
    %19 = vector.shape_cast %18 : vector<16x15xf32> to vector<1x16x15xf32>
    %cst_6 = arith.constant dense<0.000000e+00> : vector<1xf32>
    %20 = vector.multi_reduction <add>, %19, %cst_6 [1, 2] : vector<1x16x15xf32> to vector<1xf32>
    %21 = vector.shape_cast %20 : vector<1xf32> to vector<1x1x1xf32>
    %22 = vector.extract %21[0, 0, 0] : f32 from vector<1x1x1xf32>
    %23 = vector.extract_strided_slice %1 {offsets = [0, 0], sizes = [15, 16], strides = [1, 1]} : vector<16x16xf32> to vector<15x16xf32>
    %24 = vector.extract_strided_slice %1 {offsets = [1, 0], sizes = [15, 16], strides = [1, 1]} : vector<16x16xf32> to vector<15x16xf32>
    %25 = arith.subf %23, %24 : vector<15x16xf32>
    %26 = math.absf %25 : vector<15x16xf32>
    %27 = vector.extract_strided_slice %3 {offsets = [0, 0], sizes = [15, 16], strides = [1, 1]} : vector<16x16xf32> to vector<15x16xf32>
    %28 = arith.mulf %26, %27 : vector<15x16xf32>
    %29 = vector.extract_strided_slice %7 {offsets = [0, 0], sizes = [15, 16], strides = [1, 1]} : vector<16x16xi32> to vector<15x16xi32>
    %c15_i32 = arith.constant 15 : i32
    %30 = vector.broadcast %c15_i32 : i32 to vector<15x16xi32>
    %31 = arith.cmpi slt, %29, %30 : vector<15x16xi32>
    %cst_7 = arith.constant 0.000000e+00 : f32
    %32 = vector.broadcast %cst_7 : f32 to vector<15x16xf32>
    %33 = arith.select %31, %28, %32 : vector<15x16xi1>, vector<15x16xf32>
    %34 = vector.shape_cast %33 : vector<15x16xf32> to vector<1x15x16xf32>
    %cst_8 = arith.constant dense<0.000000e+00> : vector<1xf32>
    %35 = vector.multi_reduction <add>, %34, %cst_8 [1, 2] : vector<1x15x16xf32> to vector<1xf32>
    %36 = vector.shape_cast %35 : vector<1xf32> to vector<1x1x1xf32>
    %37 = vector.extract %36[0, 0, 0] : f32 from vector<1x1x1xf32>
    %c0_i32 = arith.constant 0 : i32
    %38 = arith.cmpi eq, %arg1, %c0_i32 : i32
    %39 = arith.extui %38 : i1 to i32
    %c0_i32_9 = arith.constant 0 : i32
    %40 = arith.cmpi ne, %39, %c0_i32_9 : i32
    scf.if %40 {
      %108 = vector.extract_strided_slice %1 {offsets = [0, 0], sizes = [1, 16], strides = [1, 1]} : vector<16x16xf32> to vector<1x16xf32>
      %c0_36 = arith.constant 0 : index
      %c0_37 = arith.constant 0 : index
      %109 = vector.load %arg5[%c0_36, %c0_37] : memref<1x16xf32, #tpu.memory_space<vmem>>, vector<1x16xf32>
      tpu.vector_store %arg5[%c0_36, %c0_37], %108 {strides = array<i32>} : memref<1x16xf32, #tpu.memory_space<vmem>>, vector<1x16xf32>,
      %cst_38 = arith.constant 0.000000e+00 : f32
      %110 = vector.broadcast %cst_38 : f32 to vector<1x16xf32>
      %c0_39 = arith.constant 0 : index
      %c0_40 = arith.constant 0 : index
      %111 = vector.load %arg6[%c0_39, %c0_40] : memref<1x16xf32, #tpu.memory_space<vmem>>, vector<1x16xf32>
      tpu.vector_store %arg6[%c0_39, %c0_40], %110 {strides = array<i32>} : memref<1x16xf32, #tpu.memory_space<vmem>>, vector<1x16xf32>,
    } else {
    }
    %c0_10 = arith.constant 0 : index
    %c0_11 = arith.constant 0 : index
    %41 = vector.load %arg5[%c0_10, %c0_11] : memref<1x16xf32, #tpu.memory_space<vmem>>, vector<1x16xf32>
    %42 = vector.extract_strided_slice %1 {offsets = [0, 0], sizes = [1, 16], strides = [1, 1]} : vector<16x16xf32> to vector<1x16xf32>
    %43 = arith.subf %41, %42 : vector<1x16xf32>
    %44 = math.absf %43 : vector<1x16xf32>
    %c0_12 = arith.constant 0 : index
    %c0_13 = arith.constant 0 : index
    %45 = vector.load %arg6[%c0_12, %c0_13] : memref<1x16xf32, #tpu.memory_space<vmem>>, vector<1x16xf32>
    %46 = arith.mulf %44, %45 : vector<1x16xf32>
    %c0_i32_14 = arith.constant 0 : i32
    %47 = arith.cmpi sgt, %arg1, %c0_i32_14 : i32
    %48 = vector.shape_cast %46 : vector<1x16xf32> to vector<1x1x16xf32>
    %cst_15 = arith.constant dense<0.000000e+00> : vector<1xf32>
    %49 = vector.multi_reduction <add>, %48, %cst_15 [1, 2] : vector<1x1x16xf32> to vector<1xf32>
    %50 = vector.shape_cast %49 : vector<1xf32> to vector<1x1x1xf32>
    %51 = vector.extract %50[0, 0, 0] : f32 from vector<1x1x1xf32>
    %cst_16 = arith.constant 0.000000e+00 : f32
    %52 = arith.select %47, %51, %cst_16 : f32
    %53 = arith.addf %37, %52 : f32
    %54 = vector.extract_strided_slice %1 {offsets = [15, 0], sizes = [1, 16], strides = [1, 1]} : vector<16x16xf32> to vector<1x16xf32>
    %c0_17 = arith.constant 0 : index
    %c0_18 = arith.constant 0 : index
    %55 = vector.load %arg5[%c0_17, %c0_18] : memref<1x16xf32, #tpu.memory_space<vmem>>, vector<1x16xf32>
    tpu.vector_store %arg5[%c0_17, %c0_18], %54 {strides = array<i32>} : memref<1x16xf32, #tpu.memory_space<vmem>>, vector<1x16xf32>,
    %56 = vector.extract_strided_slice %3 {offsets = [15, 0], sizes = [1, 16], strides = [1, 1]} : vector<16x16xf32> to vector<1x16xf32>
    %c0_19 = arith.constant 0 : index
    %c0_20 = arith.constant 0 : index
    %57 = vector.load %arg6[%c0_19, %c0_20] : memref<1x16xf32, #tpu.memory_space<vmem>>, vector<1x16xf32>
    tpu.vector_store %arg6[%c0_19, %c0_20], %56 {strides = array<i32>} : memref<1x16xf32, #tpu.memory_space<vmem>>, vector<1x16xf32>,
    %c15_i32_21 = arith.constant 15 : i32
    %58 = vector.broadcast %c15_i32_21 : i32 to vector<16x16xi32>
    %59 = arith.cmpi slt, %7, %58 : vector<16x16xi32>
    %cst_22 = arith.constant 0.000000e+00 : f32
    %60 = vector.broadcast %cst_22 : f32 to vector<16x16xf32>
    %61 = arith.select %59, %3, %60 : vector<16x16xi1>, vector<16x16xf32>
    %62 = vector.shape_cast %61 : vector<16x16xf32> to vector<1x16x16xf32>
    %cst_23 = arith.constant dense<0.000000e+00> : vector<1xf32>
    %63 = vector.multi_reduction <add>, %62, %cst_23 [1, 2] : vector<1x16x16xf32> to vector<1xf32>
    %64 = vector.shape_cast %63 : vector<1xf32> to vector<1x1x1xf32>
    %65 = vector.extract %64[0, 0, 0] : f32 from vector<1x1x1xf32>
    %66 = vector.extract_strided_slice %9 {offsets = [0, 0], sizes = [16, 15], strides = [1, 1]} : vector<16x16xi1> to vector<16x15xi1>
    %67 = vector.extract_strided_slice %3 {offsets = [0, 0], sizes = [16, 15], strides = [1, 1]} : vector<16x16xf32> to vector<16x15xf32>
    %cst_24 = arith.constant 0.000000e+00 : f32
    %68 = vector.broadcast %cst_24 : f32 to vector<16x15xf32>
    %69 = arith.select %66, %67, %68 : vector<16x15xi1>, vector<16x15xf32>
    %70 = vector.shape_cast %69 : vector<16x15xf32> to vector<1x16x15xf32>
    %cst_25 = arith.constant dense<0.000000e+00> : vector<1xf32>
    %71 = vector.multi_reduction <add>, %70, %cst_25 [1, 2] : vector<1x16x15xf32> to vector<1xf32>
    %72 = vector.shape_cast %71 : vector<1xf32> to vector<1x1x1xf32>
    %73 = vector.extract %72[0, 0, 0] : f32 from vector<1x1x1xf32>
    %74 = tpu.iota {dimensions = array<i32: 0>} : vector<8x128xi32>
    %75 = tpu.iota {dimensions = array<i32: 1>} : vector<8x128xi32>
    %cst_26 = arith.constant 0.000000e+00 : f32
    %76 = vector.broadcast %cst_26 : f32 to vector<8x128xf32>
    %c0_i32_27 = arith.constant 0 : i32
    %77 = vector.broadcast %c0_i32_27 : i32 to vector<8x128xi32>
    %78 = arith.cmpi eq, %74, %77 : vector<8x128xi32>
    %c0_i32_28 = arith.constant 0 : i32
    %79 = vector.broadcast %c0_i32_28 : i32 to vector<8x128xi32>
    %80 = arith.cmpi eq, %75, %79 : vector<8x128xi32>
    %81 = arith.andi %78, %80 : vector<8x128xi1>
    %82 = vector.broadcast %53 : f32 to vector<8x128xf32>
    %83 = arith.select %81, %82, %76 : vector<8x128xi1>, vector<8x128xf32>
    %c0_i32_29 = arith.constant 0 : i32
    %84 = vector.broadcast %c0_i32_29 : i32 to vector<8x128xi32>
    %85 = arith.cmpi eq, %74, %84 : vector<8x128xi32>
    %c1_i32 = arith.constant 1 : i32
    %86 = vector.broadcast %c1_i32 : i32 to vector<8x128xi32>
    %87 = arith.cmpi eq, %75, %86 : vector<8x128xi32>
    %88 = arith.andi %85, %87 : vector<8x128xi1>
    %89 = vector.broadcast %22 : f32 to vector<8x128xf32>
    %90 = arith.select %88, %89, %83 : vector<8x128xi1>, vector<8x128xf32>
    %c0_i32_30 = arith.constant 0 : i32
    %91 = vector.broadcast %c0_i32_30 : i32 to vector<8x128xi32>
    %92 = arith.cmpi eq, %74, %91 : vector<8x128xi32>
    %c2_i32 = arith.constant 2 : i32
    %93 = vector.broadcast %c2_i32 : i32 to vector<8x128xi32>
    %94 = arith.cmpi eq, %75, %93 : vector<8x128xi32>
    %95 = arith.andi %92, %94 : vector<8x128xi1>
    %96 = vector.broadcast %65 : f32 to vector<8x128xf32>
    %97 = arith.select %95, %96, %90 : vector<8x128xi1>, vector<8x128xf32>
    %c0_i32_31 = arith.constant 0 : i32
    %98 = vector.broadcast %c0_i32_31 : i32 to vector<8x128xi32>
    %99 = arith.cmpi eq, %74, %98 : vector<8x128xi32>
    %c3_i32 = arith.constant 3 : i32
    %100 = vector.broadcast %c3_i32 : i32 to vector<8x128xi32>
    %101 = arith.cmpi eq, %75, %100 : vector<8x128xi32>
    %102 = arith.andi %99, %101 : vector<8x128xi1>
    %103 = vector.broadcast %73 : f32 to vector<8x128xf32>
    %104 = arith.select %102, %103, %97 : vector<8x128xi1>, vector<8x128xf32>
    %c0_32 = arith.constant 0 : index
    %c0_33 = arith.constant 0 : index
    %c0_34 = arith.constant 0 : index
    %c0_35 = arith.constant 0 : index
    %105 = vector.load %arg4[%c0_32, %c0_33, %c0_34, %c0_35] : memref<1x1x8x128xf32, #tpu.memory_space<vmem>>, vector<1x1x8x128xf32>
    %106 = vector.shape_cast %105 : vector<1x1x8x128xf32> to vector<8x128xf32>
    %107 = vector.shape_cast %104 : vector<8x128xf32> to vector<1x1x8x128xf32>
    tpu.vector_store %arg4[%c0_32, %c0_33, %c0_34, %c0_35], %107 {strides = array<i32>} : memref<1x1x8x128xf32, #tpu.memory_space<vmem>>, vector<1x1x8x128xf32>,
    return
  }
  func.func @transform_0(%arg0: i32, %arg1: i32) -> (i32, i32, i32) {
    %c0_i32 = arith.constant 0 : i32
    %c0_i32_0 = arith.constant 0 : i32
    return %arg0, %arg1, %c0_i32 : i32, i32, i32
  }
  func.func @transform_1(%arg0: i32, %arg1: i32) -> (i32, i32, i32) {
    %c0_i32 = arith.constant 0 : i32
    %c0_i32_0 = arith.constant 0 : i32
    return %arg0, %arg1, %c0_i32 : i32, i32, i32
  }
  func.func @transform_2(%arg0: i32, %arg1: i32) -> (i32, i32, i32, i32) {
    %c0_i32 = arith.constant 0 : i32
    %c0_i32_0 = arith.constant 0 : i32
    %c0_i32_1 = arith.constant 0 : i32
    return %arg0, %arg1, %c0_i32, %c0_i32_0 : i32, i32, i32, i32
  }
}

</mosaic_0001>

<llo_original>
// kernel: tpu_custom_call.1
$region0: #{tpu_custom_call.1}
  #allocation0 [shape = 'u32[]', space=smem, size = 0x4, offset = 0x4, fixed_abs, tag = 'smem constant byte address 0x4 - core index']
  #allocation1 [shape = 'u32[144,128]{1,0:T(1,128)}', space=vmem, size = 0x12000, scoped, tag = 'internal scratch']
  #allocation2 [shape = 'f32[1,16]{1,0:T(1,128)}', space=vmem, size = 0x200, scoped, tag = 'scratch operand']
  #allocation3 [shape = 'f32[1,16]{1,0:T(1,128)}', space=vmem, size = 0x200, scoped, tag = 'scratch operand']
  %s0 = inlined_call_operand.hbm [shape: f32[8,16,16], index: 0, kind: input, shape index: {}]
  %s1 = inlined_call_operand.hbm [shape: f32[8,16,16], index: 1, kind: input, shape index: {}]
  %s2 = inlined_call_operand.hbm [shape: f32[8,1,8,128], index: 2, kind: output, shape index: {}]
  %s3 = sld [smem:[#allocation0]]
  $region53: #{tpu_custom_call.1} parent=0
    _
  %s5 = ssub.s32 1, %s3
  %s6 = scalar_select 0, %s5, %s3
  $region1: #{tpu_custom_call.1} parent=0
    #allocation4 [shape = 'u8[16384]{0}', space=vmem, size = 0x4000, scoped, tag = 'input window, operand 0']
    #allocation5 [shape = 's32[2]{0}', space=sflag, size = 0x8, scoped, tag = 'scoped memory for tpu_custom_call.1']
    #allocation6 [shape = 's32[2]{0}', space=sflag, size = 0x8, scoped, tag = 'scoped memory for tpu_custom_call.1']
    #allocation7 [shape = 'u8[16384]{0}', space=vmem, size = 0x4000, scoped, tag = 'input window, operand 1']
    #allocation8 [shape = 's32[2]{0}', space=sflag, size = 0x8, scoped, tag = 'scoped memory for tpu_custom_call.1']
    #allocation9 [shape = 'u8[8192]{0}', space=vmem, size = 0x2000, scoped, tag = 'output window, operand 0']
    %7 = vsyncpa [#allocation5], 0
    %s8 = scalar_lea.sflag [#allocation5], 1
    %9 = vsyncpa %s8, 0
    %10 = vsyncpa [#allocation8], 0
    %s11 = scalar_lea.sflag [#allocation8], 1
    %12 = vsyncpa %s11, 0
    %13 = vsyncpa [#allocation6], 0
    %s14 = scalar_lea.sflag [#allocation6], 1
    %15 = vsyncpa %s14, 0
    loop: start=0, step=1, limit=10
    $region2: #{tpu_custom_call.1} parent=1 // loop_pre_header
      _
    $region3: #{tpu_custom_call.1} parent=1 // loop_header
      %s17 = sphi 0, %s21
      %p18 = scmp.ge.s32.totalorder %s17, 10
      %s24 = sphi 0, %s36
      %s25 = sphi 0, %s32
      %s26 = sphi 0, %s24
      %s27 = sphi 0, %s25
      %s28 = sphi 0, %s26
      %s29 = sphi 0, %s27
      %s41 = sphi 0, %s43
      %s44 = sphi 0, %s41
      %s45 = sphi 0, %s44
      %s61 = sphi 0, %s45
      %s69 = sphi 0, %s71
      %s72 = sphi 0, %s69
      %s73 = sphi 0, %s72
      %s89 = sphi 0, %s73
      %s97 = sphi 0, %s99
      %s100 = sphi 0, %s97
      %s101 = sphi 0, %s100
      %s117 = sphi 0, %s101
    $region4: #{tpu_custom_call.1} parent=1 // loop_header_branch
      %20 = sbr.rel (%p18) target = $region8
    $region5: #{tpu_custom_call.1} parent=1 // loop_body
      %s22 = ssub.s32 %s17, 1
      %s23 = ssub.s32 %s17, 2
      %s30 = sadd.s32 1, %s25
      %p31 = scmp.ge.s32.totalorder %s30, 1
      %s32 = scalar_select %p31, 0, %s30
      %s33 = sadd.s32 1, %s24
      %s34 = scalar_select %p31, %s33, %s24
      %p35 = scmp.ge.s32.totalorder %s34, 8
      %s36 = scalar_select %p35, 0, %s34
      %s37 = ssub.s32 %s24, %s36
      %s38 = ssub.s32 %s25, %s32
      %s39 = sor.u32 %s37, %s38
      %p40 = scmp.eq.s32.totalorder %s39, 0
      %s42 = sadd.s32 %s41, 1
      %s43 = scalar_select %p40, %s41, %s42
      %p46 = pneg %p40
      %p47 = scmp.eq.s32.totalorder %s17, 7
      %p48 = por %p46, %p47
      %p49 = scmp.ne.s32.totalorder %s41, %s44
      %p50 = scmp.eq.s32.totalorder %s17, 0
      %p51 = por %p49, %p50
      %p52 = scmp.ne.s32.totalorder %s41, %s44
      %p53 = scmp.eq.s32.totalorder %s22, 7
      %p54 = por %p52, %p53
      %p55 = scmp.ne.s32.totalorder %s44, %s45
      %p56 = scmp.eq.s32.totalorder %s22, 0
      %p57 = por %p55, %p56
      %p58 = scmp.ne.s32.totalorder %s44, %s45
      %p59 = scmp.eq.s32.totalorder %s23, 7
      %p60 = por %p58, %p59
      %p62 = scmp.ne.s32.totalorder %s45, %s61
      %p63 = scmp.eq.s32.totalorder %s23, 0
      %p64 = por %p62, %p63
      %s65 = ssub.s32 %s24, %s36
      %s66 = ssub.s32 %s25, %s32
      %s67 = sor.u32 %s65, %s66
      %p68 = scmp.eq.s32.totalorder %s67, 0
      %s70 = sadd.s32 %s69, 1
      %s71 = scalar_select %p68, %s69, %s70
      %p74 = pneg %p68
      %p75 = scmp.eq.s32.totalorder %s17, 7
      %p76 = por %p74, %p75
      %p77 = scmp.ne.s32.totalorder %s69, %s72
      %p78 = scmp.eq.s32.totalorder %s17, 0
      %p79 = por %p77, %p78
      %p80 = scmp.ne.s32.totalorder %s69, %s72
      %p81 = scmp.eq.s32.totalorder %s22, 7
      %p82 = por %p80, %p81
      %p83 = scmp.ne.s32.totalorder %s72, %s73
      %p84 = scmp.eq.s32.totalorder %s22, 0
      %p85 = por %p83, %p84
      %p86 = scmp.ne.s32.totalorder %s72, %s73
      %p87 = scmp.eq.s32.totalorder %s23, 7
      %p88 = por %p86, %p87
      %p90 = scmp.ne.s32.totalorder %s73, %s89
      %p91 = scmp.eq.s32.totalorder %s23, 0
      %p92 = por %p90, %p91
      %s93 = ssub.s32 %s24, %s36
      %s94 = ssub.s32 %s25, %s32
      %s95 = sor.u32 %s93, %s94
      %p96 = scmp.eq.s32.totalorder %s95, 0
      %s98 = sadd.s32 %s97, 1
      %s99 = scalar_select %p96, %s97, %s98
      %p102 = pneg %p96
      %p103 = scmp.eq.s32.totalorder %s17, 7
      %p104 = por %p102, %p103
      %p105 = scmp.ne.s32.totalorder %s97, %s100
      %p106 = scmp.eq.s32.totalorder %s17, 0
      %p107 = por %p105, %p106
      %p108 = scmp.ne.s32.totalorder %s97, %s100
      %p109 = scmp.eq.s32.totalorder %s22, 7
      %p110 = por %p108, %p109
      %p111 = scmp.ne.s32.totalorder %s100, %s101
      %p112 = scmp.eq.s32.totalorder %s22, 0
      %p113 = por %p111, %p112
      %p114 = scmp.ne.s32.totalorder %s100, %s101
      %p115 = scmp.eq.s32.totalorder %s23, 7
      %p116 = por %p114, %p115
      %p118 = scmp.ne.s32.totalorder %s101, %s117
      %p119 = scmp.eq.s32.totalorder %s23, 0
      %p120 = por %p118, %p119
      %p121 = scmp.le.s32.totalorder 1, %s17
      %p122 = scmp.lt.s32.totalorder %s17, 9
      %p123 = pnand %p121, %p122
      %p124 = pneg %p123
      // Predicated region
      $region9: #{tpu_custom_call.1} parent=5 // pred_check
        _
      $region10: #{tpu_custom_call.1} parent=5 // pred_check_branch
        %126 = sbr.rel (%p123) target = $region12
      $region11: #{tpu_custom_call.1} parent=5 // pred_region
        %s127 = ssub.s32 %s17, 1
      $region12: #{tpu_custom_call.1} parent=5 // pred_fallthru
        _
      %p128 = scmp.lt.s32.totalorder %s17, 8
      // Predicated region
      $region13: #{tpu_custom_call.1} parent=5 // pred_check
        %p129 = pneg %p128
      $region14: #{tpu_custom_call.1} parent=5 // pred_check_branch
        %131 = sbr.rel (%p129) target = $region16
      $region15: #{tpu_custom_call.1} parent=5 // pred_region
        // Predicated region
        $region17: #{tpu_custom_call.1} parent=15 // pred_check
          %p132 = pneg %p51
        $region18: #{tpu_custom_call.1} parent=15 // pred_check_branch
          %134 = sbr.rel (%p132) target = $region20
        $region19: #{tpu_custom_call.1} parent=15 // pred_region
          %s135 = sand.u32 %s41, 1
          %s136 = scalar_lea.sflag [#allocation5], %s135
          %s137 = sand.u32 %s41, 1
          %s138 = smul.addr %s137, 16
          %s139 = scalar_lea.vmem [#allocation4], %s138
          %s140 = smul.u32 2, %s25
          %s142 = ssub.s32 256, 256
          %143 = vsyncadd %s136, %s142
          %s144 = smul.addr %s24, 2
          %s145 = sadd.s32 %s140, %s144
          %s146 = smul.addr %s145, 128
          %s147 = scalar_lea.hbm %s0, %s146
          %s148 = sshll.u32 %s139, 4
          %s149 = int_to_ptr.vmem [resolvable:$true] %s148
          %154 = dma.hbm_to_vmem [thread:$0]  %s147, 256, %s149, %s136, 128, 128, 8
        $region20: #{tpu_custom_call.1} parent=15 // pred_fallthru
          _
        // Predicated region
        $region21: #{tpu_custom_call.1} parent=15 // pred_check
          %p155 = pneg %p79
        $region22: #{tpu_custom_call.1} parent=15 // pred_check_branch
          %157 = sbr.rel (%p155) target = $region24
        $region23: #{tpu_custom_call.1} parent=15 // pred_region
          %s158 = sand.u32 %s69, 1
          %s159 = scalar_lea.sflag [#allocation8], %s158
          %s160 = sand.u32 %s69, 1
          %s161 = smul.addr %s160, 16
          %s162 = scalar_lea.vmem [#allocation7], %s161
          %s163 = smul.u32 2, %s25
          %s165 = ssub.s32 256, 256
          %166 = vsyncadd %s159, %s165
          %s167 = smul.addr %s24, 2
          %s168 = sadd.s32 %s163, %s167
          %s169 = smul.addr %s168, 128
          %s170 = scalar_lea.hbm %s1, %s169
          %s171 = sshll.u32 %s162, 4
          %s172 = int_to_ptr.vmem [resolvable:$true] %s171
          %177 = dma.hbm_to_vmem [thread:$0]  %s170, 256, %s172, %s159, 128, 128, 8
        $region24: #{tpu_custom_call.1} parent=15 // pred_fallthru
          _
      $region16: #{tpu_custom_call.1} parent=5 // pred_fallthru
        _
      %p178 = scmp.le.s32.totalorder 1, %s17
      %p179 = scmp.lt.s32.totalorder %s17, 9
      %p180 = pnand %p178, %p179
      %p181 = pneg %p180
      // Predicated region
      $region25: #{tpu_custom_call.1} parent=5 // pred_check
        _
      $region26: #{tpu_custom_call.1} parent=5 // pred_check_branch
        %183 = sbr.rel (%p180) target = $region28
      $region27: #{tpu_custom_call.1} parent=5 // pred_region
        %s184 = ssub.s32 %s17, 1
        %s185 = sand.u32 %s44, 1
        %s186 = scalar_lea.sflag [#allocation5], %s185
        %s187 = sand.u32 %s44, 1
        %s188 = smul.addr %s187, 16
        %s189 = scalar_lea.vmem [#allocation4], %s188
        // Predicated region
        $region29: #{tpu_custom_call.1} parent=27 // pred_check
          %p190 = pneg %p57
        $region30: #{tpu_custom_call.1} parent=27 // pred_check_branch
          %192 = sbr.rel (%p190) target = $region32
        $region31: #{tpu_custom_call.1} parent=27 // pred_region
          %193 = dma.done %s186, 256
        $region32: #{tpu_custom_call.1} parent=27 // pred_fallthru
          _
        %s194 = sand.u32 %s72, 1
        %s195 = scalar_lea.sflag [#allocation8], %s194
        %s196 = sand.u32 %s72, 1
        %s197 = smul.addr %s196, 16
        %s198 = scalar_lea.vmem [#allocation7], %s197
        // Predicated region
        $region33: #{tpu_custom_call.1} parent=27 // pred_check
          %p199 = pneg %p85
        $region34: #{tpu_custom_call.1} parent=27 // pred_check_branch
          %201 = sbr.rel (%p199) target = $region36
        $region35: #{tpu_custom_call.1} parent=27 // pred_region
          %202 = dma.done %s195, 256
        $region36: #{tpu_custom_call.1} parent=27 // pred_fallthru
          _
        %s203 = sand.u32 %s44, 1
        %s204 = scalar_lea.sflag [#allocation5], %s203
        %s205 = sand.u32 %s44, 1
        %s206 = smul.addr %s205, 16
        %s207 = scalar_lea.vmem [#allocation4], %s206
        %p208 = pneg %p57
        %p209 = pneg %p54
        %s210 = sand.u32 %s72, 1
        %s211 = scalar_lea.sflag [#allocation8], %s210
        %s212 = sand.u32 %s72, 1
        %s213 = smul.addr %s212, 16
        %s214 = scalar_lea.vmem [#allocation7], %s213
        %p215 = pneg %p85
        %p216 = pneg %p82
        %p217 = pneg %p113
        %p218 = pneg %p110
        %s219 = sand.u32 %s100, 1
        %s220 = scalar_lea.sflag [#allocation6], %s219
        %s221 = sand.u32 %s100, 1
        %s222 = smul.addr %s221, 8
        %s223 = scalar_lea.vmem [#allocation9], %s222
        %s224 = smul.u32 2, %s27
        %s225 = smul.u32 2, %s27
        %v226 = vld [vmem:[%s189] sm:$0xff]
        %v227 = vld [vmem:[%s189 + $0x8] sm:$0xff]
        %v228 = vld [vmem:[%s198] sm:$0xff]
        %v229 = vld [vmem:[%s198 + $0x8] sm:$0xff]
        %v230 = vlaneseq
        %v231 = vshrl.u32 %v230, 7
        %v232 = vadd.s32 %v231, 8
        %s233 = smul.u32 %s27, 16
        %v234 = vstv %s233
        %v235 = vadd.s32 %v234, %v231
        %v236 = vadd.s32 %v234, %v232
        %vm237 = vcmp.lt.s32.totalorder %v235, 16
        %vm238 = vcmp.lt.s32.totalorder %v236, 16
        %241 = vrot.lane.b32.xlu0 %v226, 127
        %v242 = vpop.permute.xlu0 %241
        %243 = vrot.lane.b32.xlu0 %v227, 127
        %v244 = vpop.permute.xlu0 %243
        %v247 = vsub.f32 %v226, %v242
        %v248 = vsub.f32 %v227, %v244
        %v249 = vand.u32 2147483647, %v247
        %v250 = vand.u32 2147483647, %v248
        %v251 = vmul.f32 %v249, %v228
        %v252 = vmul.f32 %v250, %v229
        %v253 = vsel %vm237, %v251, 0.0
        %v254 = vsel %vm238, %v252, 0.0
        %vm255 = vcmask 121856
        %v256 = vsel %vm255, %v253, 0.0
        %v257 = vsel %vm255, %v254, 0.0
        %v258 = vadd.f32 %v256, %v257
        %259 = vadd.xlane.f32.xlu0 %v258
        %v260 = vpop.xlane.xlu0 %259
        %v261 = vrot.slane %v260, 4
        %v262 = vadd.f32 %v260, %v261
        %v263 = vrot.slane %v262, 2
        %v264 = vadd.f32 %v262, %v263
        %v265 = vrot.slane %v264, 1
        %v266 = vadd.f32 %v264, %v265
        %s267 = vtos %v266
        %vm268 = vcmask 1046528
        %v269 = vrot.slane %v226, 1
        %v270 = vrot.slane %v227, 1
        %v271 = vsel %vm268, %v269, %v270
        %v274 = vsub.f32 %v226, %v271
        %v275 = vsub.f32 %v227, %v270
        %v276 = vand.u32 2147483647, %v274
        %v277 = vand.u32 2147483647, %v275
        %v278 = vmul.f32 %v276, %v228
        %v279 = vmul.f32 %v277, %v229
        %vm280 = vcmp.lt.s32.totalorder %v235, 15
        %vm281 = vcmp.lt.s32.totalorder %v236, 15
        %v282 = vsel %vm280, %v278, 0.0
        %v283 = vsel %vm281, %v279, 0.0
        %vm284 = vcmask 130048
        %v285 = vsel %vm284, %v282, 0.0
        %vm286 = vcmask 129024
        %v287 = vsel %vm286, %v283, 0.0
        %v288 = vadd.f32 %v285, %v287
        %289 = vadd.xlane.f32.xlu0 %v288
        %v290 = vpop.xlane.xlu0 %289
        %v291 = vrot.slane %v290, 4
        %v292 = vadd.f32 %v290, %v291
        %v293 = vrot.slane %v292, 2
        %v294 = vadd.f32 %v292, %v293
        %v295 = vrot.slane %v294, 1
        %v296 = vadd.f32 %v294, %v295
        %s297 = vtos %v296
        %p298 = scmp.eq.s32.totalorder %s27, 0
        // Predicated region
        $region37: #{tpu_custom_call.1} parent=27 // pred_check
          %p299 = pneg %p298
        $region38: #{tpu_custom_call.1} parent=27 // pred_check_branch
          %301 = sbr.rel (%p299) target = $region40
        $region39: #{tpu_custom_call.1} parent=27 // pred_region
          %vm302 = vcmask 122880
          %303 = vst.msk [vmem:[#allocation2] sm:$0x1] %vm302, %v226
          %304 = vst.msk [vmem:[#allocation3] sm:$0x1] %vm302, 0.0
        $region40: #{tpu_custom_call.1} parent=27 // pred_fallthru
          _
        %v305 = vld [vmem:[#allocation2] sm:$0x1]
        %v306 = vsub.f32 %v305, %v226
        %v307 = vand.u32 2147483647, %v306
        %v308 = vld [vmem:[#allocation3] sm:$0x1]
        %v309 = vmul.f32 %v307, %v308
        %p310 = scmp.gt.s32.totalorder %s27, 0
        %vm311 = vcmask 122880
        %v312 = vsel %vm311, %v309, 0.0
        %313 = vadd.xlane.f32.xlu0 %v312
        %v314 = vpop.xlane.xlu0 %313
        %v315 = vrot.slane %v314, 4
        %v316 = vadd.f32 %v314, %v315
        %v317 = vrot.slane %v316, 2
        %v318 = vadd.f32 %v316, %v317
        %v319 = vrot.slane %v318, 1
        %v320 = vadd.f32 %v318, %v319
        %s321 = vtos %v320
        %s322 = scalar_select %p310, %s321, 0.0
        %s323 = sadd.f32 %s297, %s322
        %vm324 = vcmask 130055
        %325 = vst.msk [vmem:[#allocation2 - $0x7] sm:$0x80] %vm324, %v227
        %326 = vst.msk [vmem:[#allocation3 - $0x7] sm:$0x80] %vm324, %v229
        %v327 = vsel %vm280, %v228, 0.0
        %v328 = vsel %vm281, %v229, 0.0
        %v329 = vsel %vm284, %v327, 0.0
        %v330 = vsel %vm284, %v328, 0.0
        %v331 = vadd.f32 %v329, %v330
        %332 = vadd.xlane.f32.xlu0 %v331
        %v333 = vpop.xlane.xlu0 %332
        %v334 = vrot.slane %v333, 4
        %v335 = vadd.f32 %v333, %v334
        %v336 = vrot.slane %v335, 2
        %v337 = vadd.f32 %v335, %v336
        %v338 = vrot.slane %v337, 1
        %v339 = vadd.f32 %v337, %v338
        %s340 = vtos %v339
        %v341 = vsel %vm237, %v228, 0.0
        %v342 = vsel %vm238, %v229, 0.0
        %v343 = vsel %vm255, %v341, 0.0
        %v344 = vsel %vm255, %v342, 0.0
        %v345 = vadd.f32 %v343, %v344
        %346 = vadd.xlane.f32.xlu0 %v345
        %v347 = vpop.xlane.xlu0 %346
        %v348 = vrot.slane %v347, 4
        %v349 = vadd.f32 %v347, %v348
        %v350 = vrot.slane %v349, 2
        %v351 = vadd.f32 %v349, %v350
        %v352 = vrot.slane %v351, 1
        %v353 = vadd.f32 %v351, %v352
        %s354 = vtos %v353
        %v355 = vlaneseq
        %v356 = vand.u32 %v355, 127
        %vm357 = vcmp.eq.s32.totalorder %v231, 0
        %vm358 = vcmp.eq.s32.totalorder %v356, 0
        %vm359 = vmand %vm357, %vm358
        %v360 = vstv %s323
        %v361 = vsel %vm359, %v360, 0.0
        %vm362 = vcmp.eq.s32.totalorder %v356, 1
        %vm363 = vmand %vm357, %vm362
        %v364 = vstv %s267
        %v365 = vsel %vm363, %v364, %v361
        %vm366 = vcmp.eq.s32.totalorder %v356, 2
        %vm367 = vmand %vm357, %vm366
        %v368 = vstv %s340
        %v369 = vsel %vm367, %v368, %v365
        %vm370 = vcmp.eq.s32.totalorder %v356, 3
        %vm371 = vmand %vm357, %vm370
        %v372 = vstv %s354
        %v373 = vsel %vm371, %v372, %v369
        %374 = vst [vmem:[%s223] sm:$0xff] %v373
        %s375 = sand.u32 %s100, 1
        %s376 = scalar_lea.sflag [#allocation6], %s375
        %s377 = sand.u32 %s100, 1
        %s378 = smul.addr %s377, 8
        %s379 = scalar_lea.vmem [#allocation9], %s378
        // Predicated region
        $region41: #{tpu_custom_call.1} parent=27 // pred_check
          %p380 = pneg %p110
        $region42: #{tpu_custom_call.1} parent=27 // pred_check_branch
          %382 = sbr.rel (%p380) target = $region44
        $region43: #{tpu_custom_call.1} parent=27 // pred_region
          %s384 = ssub.s32 128, 128
          %385 = vsyncadd %s376, %s384
          %s386 = sadd.s32 %s27, %s26
          %s387 = smul.addr %s386, 128
          %s388 = scalar_lea.hbm %s2, %s387
          %s390 = sshll.u32 %s379, 4
          %s391 = int_to_ptr.vmem [resolvable:$true] %s390
          %393 = dma.vmem_to_hbm [thread:$0]  %s391, 128, %s388, %s376
        $region44: #{tpu_custom_call.1} parent=27 // pred_fallthru
          _
      $region28: #{tpu_custom_call.1} parent=5 // pred_fallthru
        _
      %p394 = scmp.le.s32.totalorder 2, %s17
      // Predicated region
      $region45: #{tpu_custom_call.1} parent=5 // pred_check
        %p395 = pneg %p394
      $region46: #{tpu_custom_call.1} parent=5 // pred_check_branch
        %397 = sbr.rel (%p395) target = $region48
      $region47: #{tpu_custom_call.1} parent=5 // pred_region
        %s398 = ssub.s32 %s17, 2
        // Predicated region
        $region49: #{tpu_custom_call.1} parent=47 // pred_check
          %p399 = pneg %p116
        $region50: #{tpu_custom_call.1} parent=47 // pred_check_branch
          %401 = sbr.rel (%p399) target = $region52
        $region51: #{tpu_custom_call.1} parent=47 // pred_region
          %s402 = sand.u32 %s101, 1
          %s403 = scalar_lea.sflag [#allocation6], %s402
          %s404 = sand.u32 %s101, 1
          %s405 = smul.addr %s404, 8
          %s406 = scalar_lea.vmem [#allocation9], %s405
          %407 = dma.done %s403, 128
        $region52: #{tpu_custom_call.1} parent=47 // pred_fallthru
          _
      $region48: #{tpu_custom_call.1} parent=5 // pred_fallthru
        _
    $region6: #{tpu_custom_call.1} parent=1 // loop_footer
      %s21 = sadd.s32 1, %s17
    $region7: #{tpu_custom_call.1} parent=1 // loop_footer_branch
      %16 = sbr.rel target = $region3
    $region8: #{tpu_custom_call.1} parent=1 // loop_exit
      _
    %408 = vsyncpa [#allocation5], 1
    %s409 = scalar_lea.sflag [#allocation5], 1
    %410 = vsyncpa %s409, 1
    %411 = vsyncpa [#allocation8], 1
    %s412 = scalar_lea.sflag [#allocation8], 1
    %413 = vsyncpa %s412, 1
    %414 = vsyncpa [#allocation6], 1
    %s415 = scalar_lea.sflag [#allocation6], 1
    %416 = vsyncpa %s415, 1

</llo_original>
